<compile_context>
chip_gen: v7x
topology: tpu7x:2x2x1
jax: 0.10.0
libtpu: 0.0.40
codegen_flags: <defaults>
</compile_context>

<pallas_src>
import math
import functools

import jax
import jax.numpy as jnp
from jax.experimental import pallas as pl
from jax.experimental.pallas import tpu as pltpu


_VMEM_LIMIT = 32 * 1024 * 1024


def _pick_tile(n, candidates):
    """Largest candidate that evenly divides n, else the full extent."""
    for c in candidates:
        if n >= c and n % c == 0:
            return c
    return n


# ----------------------- fused matmul (+BN stats) kernel ---------------------

def _mm_body(a_ref, b_ref, o_ref, acc_ref, activation, sum_ref=None,
             sq_ref=None):
    k = pl.program_id(3)

    @pl.when(k == 0)
    def _init():
        acc_ref[...] = jnp.zeros_like(acc_ref)

    acc_ref[...] += jnp.dot(a_ref[0], b_ref[0],
                            preferred_element_type=jnp.float32)

    @pl.when(k == pl.num_programs(3) - 1)
    def _finalize():
        acc = acc_ref[...]
        if sum_ref is not None:
            # Per-column partial BatchNorm statistics for this row tile,
            # computed from the f32 accumulator (no bf16 rounding in the
            # stats; no padded rows exist, so no masking is needed).
            sum_ref[0, 0] = jnp.sum(acc, axis=0, keepdims=True)
            sq_ref[0, 0] = jnp.sum(acc * acc, axis=0, keepdims=True)
        if activation == "tanh":
            acc = jnp.tanh(acc)
        o_ref[0] = acc.astype(o_ref.dtype)


def _mm_stats_kernel(a_ref, b_ref, o_ref, sum_ref, sq_ref, acc_ref, *,
                     activation):
    _mm_body(a_ref, b_ref, o_ref, acc_ref, activation, sum_ref, sq_ref)


def _mm_kernel(a_ref, b_ref, o_ref, acc_ref, *, activation):
    _mm_body(a_ref, b_ref, o_ref, acc_ref, activation)


def pallas_matmul_fused(a, b, *, out_dtype=jnp.bfloat16, activation=None,
                        emit_stats=True):
    """Batched tiled matmul (P,M,K) @ (P,K,Npad) -> (P,M,Npad).

    With emit_stats=True also returns per-(phase, row-tile) column sums and
    sums of squares of the f32 accumulator, each of shape (P, M//tm, 1, Npad),
    for fused BN batch statistics.  Npad must be a multiple of 128.
    """
    P, M, K = a.shape
    Pb, Kb, N = b.shape
    assert (P, K) == (Pb, Kb) and N % 128 == 0
    tm = _pick_tile(M, (512, 256, 128, 64, 32, 16, 8))
    tn = _pick_tile(N, (512, 256, 128))
    tk = _pick_tile(K, (512, 256, 128))
    n_i, n_j, n_k = M // tm, N // tn, K // tk

    out_shapes = [jax.ShapeDtypeStruct((P, M, N), out_dtype)]
    out_specs = [pl.BlockSpec((1, tm, tn), lambda p, i, j, k: (p, i, j))]
    if emit_stats:
        out_shapes += [jax.ShapeDtypeStruct((P, n_i, 1, N), jnp.float32)] * 2
        out_specs += [pl.BlockSpec((1, 1, 1, tn),
                                   lambda p, i, j, k: (p, i, 0, j))] * 2
        kernel = functools.partial(_mm_stats_kernel, activation=activation)
    else:
        kernel = functools.partial(_mm_kernel, activation=activation)

    res = pl.pallas_call(
        kernel,
        out_shape=tuple(out_shapes),
        grid=(P, n_i, n_j, n_k),
        in_specs=[
            pl.BlockSpec((1, tm, tk), lambda p, i, j, k: (p, i, k)),
            pl.BlockSpec((1, tk, tn), lambda p, i, j, k: (p, k, j)),
        ],
        out_specs=tuple(out_specs),
        scratch_shapes=[pltpu.VMEM((tm, tn), jnp.float32)],
        compiler_params=pltpu.CompilerParams(
            dimension_semantics=("parallel", "parallel", "parallel",
                                 "arbitrary"),
            vmem_limit_bytes=_VMEM_LIMIT,
        ),
    )(a, b)
    return res if emit_stats else res[0]


# --------------------- tiled affine + activation kernel ----------------------

def _scale_act_kernel(y_ref, a_ref, b_ref, o_ref, *, relu):
    z = y_ref[...].astype(jnp.float32) * a_ref[...] + b_ref[...]
    if relu:
        z = jnp.maximum(z, 0.0)
    o_ref[...] = z.astype(o_ref.dtype)


def pallas_scale_act(y, a, b, *, relu, out_dtype=jnp.bfloat16):
    """Row/column tiled  out = act(y * a + b)  with per-column a, b."""
    R, C = y.shape
    tr = _pick_tile(R, (512, 256, 128, 64, 32, 16, 8))
    tc = _pick_tile(C, (1024, 512, 256, 128))
    return pl.pallas_call(
        functools.partial(_scale_act_kernel, relu=relu),
        out_shape=jax.ShapeDtypeStruct((R, C), out_dtype),
        grid=(R // tr, C // tc),
        in_specs=[
            pl.BlockSpec((tr, tc), lambda i, j: (i, j)),
            pl.BlockSpec((1, tc), lambda i, j: (0, j)),
            pl.BlockSpec((1, tc), lambda i, j: (0, j)),
        ],
        out_specs=pl.BlockSpec((tr, tc), lambda i, j: (i, j)),
        compiler_params=pltpu.CompilerParams(
            dimension_semantics=("parallel", "parallel"),
            vmem_limit_bytes=_VMEM_LIMIT,
        ),
    )(y, a.reshape(1, C), b.reshape(1, C))


# -------------------- ConvTranspose2d lowering (JAX glue) --------------------

# For k=4, s=2, p=1: output row 2*q + r pulls from padded-input row q + off
# with kernel row kidx, for (off, kidx) in _TAPS[r] (same along the W axis).
_TAPS = {0: ((0, 3), (1, 1)), 1: ((1, 2), (2, 0))}


def stem_cols(x_nhwc, w):
    """ConvTranspose2d(k, stride=1, pad=0) on a 1x1 input == dense matmul.

    Output columns are ordered (ky, kx, cout) so the result reshapes directly
    to NHWC and per-channel stats regroup as (k*k, Cout)."""
    n, h, wd, cin = x_nhwc.shape
    assert h == 1 and wd == 1
    cin2, cout, kh, kw = w.shape
    assert cin2 == cin
    A = x_nhwc.reshape(n, cin)
    B = jnp.transpose(w, (0, 2, 3, 1)).reshape(cin, kh * kw * cout)
    return A[None], B[None], (n, kh, kw, cout)


def phase_conv_cols(x_nhwc, w):
    """ConvTranspose2d(k=4, stride=2, pad=1) as 4 sub-pixel phase convs."""
    n, h, wd, cin = x_nhwc.shape
    cin2, cout, kh, kw = w.shape
    assert cin2 == cin and kh == 4 and kw == 4
    xp = jnp.pad(x_nhwc, ((0, 0), (1, 1), (1, 1), (0, 0)))
    a_list, b_list = [], []
    for ry in (0, 1):
        for rx in (0, 1):
            taps_x, taps_w = [], []
            for sy, ky in _TAPS[ry]:
                for sx, kx in _TAPS[rx]:
                    taps_x.append(xp[:, sy:sy + h, sx:sx + wd, :])
                    taps_w.append(w[:, :, ky, kx])           # (Cin, Cout)
            a_list.append(
                jnp.stack(taps_x, axis=3).reshape(n * h * wd, 4 * cin))
            b_list.append(jnp.stack(taps_w, axis=0).reshape(4 * cin, cout))
    return jnp.stack(a_list), jnp.stack(b_list), (n, h, wd, cout)


def interleave_phases(yp):
    """(4, N, H, W, C) phase outputs (p = 2*ry + rx)  ->  (N, 2H, 2W, C)."""
    p, n, h, w, c = yp.shape
    y6 = jnp.transpose(yp.reshape(2, 2, n, h, w, c), (2, 3, 0, 4, 1, 5))
    return y6.reshape(n, 2 * h, 2 * w, c)


def _pad_cols(m, mult=128):
    c = m.shape[-1]
    cp = ((c + mult - 1) // mult) * mult
    if cp != c:
        m = jnp.pad(m, [(0, 0)] * (m.ndim - 1) + [(0, cp - c)])
    return m, cp


def output_convT_final(x_nhwc, w):
    """Final ConvTranspose2d(k=4, s=2, p=1, small Cout) + tanh.

    Computes T = X(N*H*W, Cin) @ W16(Cin, 16*Cout) with the Pallas matmul
    kernel (per-pixel contribution to each of the 16 kernel taps), then
    overlap-adds 4 shifted taps per output parity phase and interleaves.
    Avoids the 16x phase-im2col A matrix and the 128x-padded output store.
    """
    n, h, wd, cin = x_nhwc.shape
    cin2, cout, kh, kw = w.shape
    assert cin2 == cin and kh == 4 and kw == 4
    ctrue = kh * kw * cout
    A = x_nhwc.reshape(1, n * h * wd, cin).astype(jnp.bfloat16)
    B = jnp.transpose(w, (0, 2, 3, 1)).reshape(1, cin, ctrue)
    B, _ = _pad_cols(B.astype(jnp.bfloat16))               # lane-dense N

    T = pallas_matmul_fused(A, B, out_dtype=jnp.float32, activation=None,
                            emit_stats=False)
    T6 = T[0, :, :ctrue].reshape(n, h, wd, kh, kw, cout)
    Tp = jnp.pad(T6, ((0, 0), (1, 1), (1, 1), (0, 0), (0, 0), (0, 0)))

    phases = []
    for ry in (0, 1):
        for rx in (0, 1):
            acc = None
            for sy, ky in _TAPS[ry]:
                for sx, kx in _TAPS[rx]:
                    v = Tp[:, sy:sy + h, sx:sx + wd, ky, kx, :]
                    acc = v if acc is None else acc + v
            phases.append(acc)
    yp = jnp.stack(phases)                                   # (4, n, h, w, C)
    # TODO(synk): the overlap-add + tanh epilogue stays in (XLA-fused) glue;
    # it touches ~1/8 of the HBM bytes of the matmul so a dedicated kernel
    # is not worth the shifted-slice block plumbing.
    return jnp.tanh(interleave_phases(yp))


# --------------------------------- Generator ---------------------------------

class PallasDCGANGenerator:
    """Mirrors Generator.__init__ layer construction (parameterized sizes)."""

    def __init__(self, key, nz, ngf, nc):
        cfgs = [(nz, ngf * ngf // 4, 4, 1, 0, True)]                 # stem
        for i in reversed(range(int(math.log2(ngf // 4)))):          # up blocks
            cfgs.append((ngf * 2 ** (i + 1), ngf * 2 ** i, 4, 2, 1, True))
        cfgs.append((ngf, nc, 4, 2, 1, False))                       # output
        self.params = []
        for (cin, cout, k, s, p, bn) in cfgs:
            key, wk, gk, bk = jax.random.split(key, 4)
            w = 0.02 * jax.random.normal(wk, (cin, cout, k, k), jnp.float32)
            gamma = (1.0 + 0.01 * jax.random.normal(gk, (cout,), jnp.float32)
                     ) if bn else None
            beta = (0.01 * jax.random.normal(bk, (cout,), jnp.float32)
                    ) if bn else None
            self.params.append(dict(w=w, gamma=gamma, beta=beta,
                                    stride=s, pad=p, bn=bn))
        # TODO(synk): BatchNorm running-stat buffer updates (training-side
        # state) are not modeled; forward uses batch statistics exactly as
        # PyTorch does in train mode.

    def __call__(self, x_nchw):
        eps = 1e-5
        x = jnp.transpose(x_nchw, (0, 2, 3, 1)).astype(jnp.bfloat16)  # NHWC
        for lp in self.params:
            w = lp["w"]
            if not lp["bn"]:                       # final conv + tanh
                x = output_convT_final(x, w)
                continue
            if lp["stride"] == 1:                  # stem (1x1 input)
                A, B, sp = stem_cols(x, w)         # sp=(N,4,4,Cout)
                group = sp[1] * sp[2]              # cols per channel
                phased = False
            else:
                A, B, sp = phase_conv_cols(x, w)   # sp=(N,H,W,Cout)
                group = 1
                phased = True
            cout = sp[3]
            ctrue = B.shape[-1]
            B, npad = _pad_cols(B.astype(jnp.bfloat16))    # lane-dense N
            A = A.astype(jnp.bfloat16)

            y, sums, sqs = pallas_matmul_fused(A, B, out_dtype=jnp.bfloat16,
                                               activation=None)
            P, M, _ = A.shape

            # --- BatchNorm batch statistics from the fused partial sums ---
            col_sum = jnp.sum(sums, axis=(0, 1, 2))[:ctrue]
            col_sq = jnp.sum(sqs, axis=(0, 1, 2))[:ctrue]
            ch_sum = col_sum.reshape(group, cout).sum(axis=0)
            ch_sq = col_sq.reshape(group, cout).sum(axis=0)
            count = P * M * group                          # == N*OH*OW
            mean = ch_sum / count
            var = jnp.maximum(ch_sq / count - mean * mean, 0.0)
            scale = lp["gamma"] * jax.lax.rsqrt(var + eps)
            shift = lp["beta"] - mean * scale
            a_cols = jnp.pad(jnp.tile(scale, group), (0, npad - ctrue))
            b_cols = jnp.pad(jnp.tile(shift, group), (0, npad - ctrue))

            z = pallas_scale_act(y.reshape(P * M, npad), a_cols, b_cols,
                                 relu=True, out_dtype=jnp.bfloat16)
            z = z[:, :ctrue]
            if phased:
                x = interleave_phases(z.reshape((4,) + sp))
            else:
                x = z.reshape(sp)
        return jnp.transpose(x.astype(jnp.float32), (0, 3, 1, 2))     # NCHW


# ------------------------------ pure-JAX reference ---------------------------

def ref_forward(x_nchw, params):
    x = jnp.transpose(x_nchw, (0, 2, 3, 1)).astype(jnp.float32)
    for lp in params:
        w = lp["w"]
        k, s, p = w.shape[2], lp["stride"], lp["pad"]
        wf = jnp.transpose(w[:, :, ::-1, ::-1], (2, 3, 0, 1))   # (k,k,Cin,Cout)
        y = jax.lax.conv_general_dilated(
            x, wf, window_strides=(1, 1),
            padding=[(k - 1 - p, k - 1 - p)] * 2,
            lhs_dilation=(s, s),
            dimension_numbers=("NHWC", "HWIO", "NHWC"))
        if lp["bn"]:
            mean = y.mean(axis=(0, 1, 2), keepdims=True)
            var = y.var(axis=(0, 1, 2), keepdims=True)
            y = (y - mean) / jnp.sqrt(var + 1e-5) * lp["gamma"] + lp["beta"]
            y = jnp.maximum(y, 0.0)
        else:
            y = jnp.tanh(y)
        x = y
    return jnp.transpose(x, (0, 3, 1, 2))


# ------------------------------------ main -----------------------------------

if __name__ == "__main__":
    # Small config consistent with the module structure (nz/ngf scaled down).
    NZ, NGF, NC_OUT, BATCH = 16, 16, 1, 2

    x = jax.random.normal(jax.random.PRNGKey(0), (BATCH, NZ, 1, 1), jnp.float32)
    gen = PallasDCGANGenerator(jax.random.PRNGKey(1), NZ, NGF, NC_OUT)

    out = jax.block_until_ready(gen(x))

    expected_hw = 2 * NGF   # 4 * 2^log2(ngf//4) * 2
    assert out.shape == (BATCH, NC_OUT, expected_hw, expected_hw), out.shape
    assert bool(jnp.all(jnp.isfinite(out)))

    ref = jax.block_until_ready(ref_forward(x, gen.params))
    max_err = float(jnp.max(jnp.abs(out - ref)))
    assert max_err < 5e-2, f"mismatch vs reference: {max_err}"

    print("KERNEL_OK")
</pallas_src>

<mosaic_0001>
module attributes {stable_mosaic.version = 11 : i64} {
  func.func @_mm_stats_kernel(%arg0: i32, %arg1: i32, %arg2: i32, %arg3: i32, %arg4: memref<1x2x16xbf16, #tpu.memory_space<vmem>>, %arg5: memref<1x16x512xbf16, #tpu.memory_space<vmem>>, %arg6: memref<1x2x512xbf16, #tpu.memory_space<vmem>>, %arg7: memref<1x1x1x512xf32, #tpu.memory_space<vmem>>, %arg8: memref<1x1x1x512xf32, #tpu.memory_space<vmem>>, %arg9: memref<2x512xf32, #tpu.memory_space<vmem>>) attributes {dimension_semantics = [#tpu.dimension_semantics<parallel>, #tpu.dimension_semantics<parallel>, #tpu.dimension_semantics<parallel>, #tpu.dimension_semantics<arbitrary>], iteration_bounds = array<i64: 1, 1, 2, 1>, scalar_prefetch = 0 : i64, scratch_operands = 1 : i64, tpu.core_type = #tpu.core_type<tc>, window_params = [{transform_indices = @transform_0, window_bounds = array<i64: 1, 2, 16>}, {transform_indices = @transform_1, window_bounds = array<i64: 1, 16, 512>}, {transform_indices = @transform_2, window_bounds = array<i64: 1, 2, 512>}, {transform_indices = @transform_3, window_bounds = array<i64: 1, 1, 1, 512>}, {transform_indices = @transform_4, window_bounds = array<i64: 1, 1, 1, 512>}]} {
    %c0_i32 = arith.constant 0 : i32
    %0 = arith.cmpi eq, %arg3, %c0_i32 : i32
    %1 = arith.extui %0 : i1 to i32
    %c0_i32_0 = arith.constant 0 : i32
    %2 = arith.cmpi ne, %1, %c0_i32_0 : i32
    scf.if %2 {
      %cst_12 = arith.constant 0.000000e+00 : f32
      %14 = vector.broadcast %cst_12 : f32 to vector<2x512xf32>
      %c0_13 = arith.constant 0 : index
      %c0_14 = arith.constant 0 : index
      %15 = vector.load %arg9[%c0_13, %c0_14] : memref<2x512xf32, #tpu.memory_space<vmem>>, vector<2x512xf32>
      tpu.vector_store %arg9[%c0_13, %c0_14], %14 {strides = array<i32>} : memref<2x512xf32, #tpu.memory_space<vmem>>, vector<2x512xf32>,
    } else {
    }
    %c0 = arith.constant 0 : index
    %c0_1 = arith.constant 0 : index
    %3 = vector.load %arg9[%c0, %c0_1] : memref<2x512xf32, #tpu.memory_space<vmem>>, vector<2x512xf32>
    %c0_2 = arith.constant 0 : index
    %c0_3 = arith.constant 0 : index
    %c0_4 = arith.constant 0 : index
    %4 = vector.load %arg4[%c0_2, %c0_3, %c0_4] : memref<1x2x16xbf16, #tpu.memory_space<vmem>>, vector<1x2x16xbf16>
    %5 = vector.shape_cast %4 : vector<1x2x16xbf16> to vector<2x16xbf16>
    %c0_5 = arith.constant 0 : index
    %c0_6 = arith.constant 0 : index
    %c0_7 = arith.constant 0 : index
    %6 = vector.load %arg5[%c0_5, %c0_6, %c0_7] : memref<1x16x512xbf16, #tpu.memory_space<vmem>>, vector<1x16x512xbf16>
    %7 = vector.shape_cast %6 : vector<1x16x512xbf16> to vector<16x512xbf16>
    %cst = arith.constant dense<0.000000e+00> : vector<2x512xf32>
    %8 = tpu.matmul %5, %7, %cst {dimension_numbers = #tpu.dot_dimension_numbers<[1], [0], [0], [1], [0, 0, 1, 1], [], []>} : vector<2x16xbf16>, vector<16x512xbf16>, vector<2x512xf32> -> vector<2x512xf32>
    %9 = arith.addf %3, %8 : vector<2x512xf32>
    %c0_8 = arith.constant 0 : index
    %c0_9 = arith.constant 0 : index
    %10 = vector.load %arg9[%c0_8, %c0_9] : memref<2x512xf32, #tpu.memory_space<vmem>>, vector<2x512xf32>
    tpu.vector_store %arg9[%c0_8, %c0_9], %9 {strides = array<i32>} : memref<2x512xf32, #tpu.memory_space<vmem>>, vector<2x512xf32>,
    %c0_i32_10 = arith.constant 0 : i32
    %11 = arith.cmpi eq, %arg3, %c0_i32_10 : i32
    %12 = arith.extui %11 : i1 to i32
    %c0_i32_11 = arith.constant 0 : i32
    %13 = arith.cmpi ne, %12, %c0_i32_11 : i32
    scf.if %13 {
      %c0_12 = arith.constant 0 : index
      %c0_13 = arith.constant 0 : index
      %14 = vector.load %arg9[%c0_12, %c0_13] : memref<2x512xf32, #tpu.memory_space<vmem>>, vector<2x512xf32>
      %cst_14 = arith.constant dense<0.000000e+00> : vector<512xf32>
      %15 = vector.multi_reduction <add>, %14, %cst_14 [0] : vector<2x512xf32> to vector<512xf32>
      %16 = vector.shape_cast %15 : vector<512xf32> to vector<1x512xf32>
      %c0_15 = arith.constant 0 : index
      %c0_16 = arith.constant 0 : index
      %c0_17 = arith.constant 0 : index
      %c0_18 = arith.constant 0 : index
      %17 = vector.load %arg7[%c0_15, %c0_16, %c0_17, %c0_18] : memref<1x1x1x512xf32, #tpu.memory_space<vmem>>, vector<1x1x1x512xf32>
      %18 = vector.shape_cast %17 : vector<1x1x1x512xf32> to vector<1x512xf32>
      %19 = vector.shape_cast %16 : vector<1x512xf32> to vector<1x1x1x512xf32>
      tpu.vector_store %arg7[%c0_15, %c0_16, %c0_17, %c0_18], %19 {strides = array<i32>} : memref<1x1x1x512xf32, #tpu.memory_space<vmem>>, vector<1x1x1x512xf32>,
      %20 = arith.mulf %14, %14 : vector<2x512xf32>
      %cst_19 = arith.constant dense<0.000000e+00> : vector<512xf32>
      %21 = vector.multi_reduction <add>, %20, %cst_19 [0] : vector<2x512xf32> to vector<512xf32>
      %22 = vector.shape_cast %21 : vector<512xf32> to vector<1x512xf32>
      %c0_20 = arith.constant 0 : index
      %c0_21 = arith.constant 0 : index
      %c0_22 = arith.constant 0 : index
      %c0_23 = arith.constant 0 : index
      %23 = vector.load %arg8[%c0_20, %c0_21, %c0_22, %c0_23] : memref<1x1x1x512xf32, #tpu.memory_space<vmem>>, vector<1x1x1x512xf32>
      %24 = vector.shape_cast %23 : vector<1x1x1x512xf32> to vector<1x512xf32>
      %25 = vector.shape_cast %22 : vector<1x512xf32> to vector<1x1x1x512xf32>
      tpu.vector_store %arg8[%c0_20, %c0_21, %c0_22, %c0_23], %25 {strides = array<i32>} : memref<1x1x1x512xf32, #tpu.memory_space<vmem>>, vector<1x1x1x512xf32>,
      %26 = arith.truncf %14 : vector<2x512xf32> to vector<2x512xbf16>
      %c0_24 = arith.constant 0 : index
      %c0_25 = arith.constant 0 : index
      %c0_26 = arith.constant 0 : index
      %27 = vector.load %arg6[%c0_24, %c0_25, %c0_26] : memref<1x2x512xbf16, #tpu.memory_space<vmem>>, vector<1x2x512xbf16>
      %28 = vector.shape_cast %27 : vector<1x2x512xbf16> to vector<2x512xbf16>
      %29 = vector.shape_cast %26 : vector<2x512xbf16> to vector<1x2x512xbf16>
      tpu.vector_store %arg6[%c0_24, %c0_25, %c0_26], %29 {strides = array<i32>} : memref<1x2x512xbf16, #tpu.memory_space<vmem>>, vector<1x2x512xbf16>,
    } else {
    }
    return
  }
  func.func @transform_0(%arg0: i32, %arg1: i32, %arg2: i32, %arg3: i32) -> (i32, i32, i32) {
    %c0_i32 = arith.constant 0 : i32
    return %arg0, %arg1, %arg3 : i32, i32, i32
  }
  func.func @transform_1(%arg0: i32, %arg1: i32, %arg2: i32, %arg3: i32) -> (i32, i32, i32) {
    %c0_i32 = arith.constant 0 : i32
    return %arg0, %arg3, %arg2 : i32, i32, i32
  }
  func.func @transform_2(%arg0: i32, %arg1: i32, %arg2: i32, %arg3: i32) -> (i32, i32, i32) {
    %c0_i32 = arith.constant 0 : i32
    return %arg0, %arg1, %arg2 : i32, i32, i32
  }
  func.func @transform_3(%arg0: i32, %arg1: i32, %arg2: i32, %arg3: i32) -> (i32, i32, i32, i32) {
    %c0_i32 = arith.constant 0 : i32
    %c0_i32_0 = arith.constant 0 : i32
    return %arg0, %arg1, %c0_i32, %arg2 : i32, i32, i32, i32
  }
  func.func @transform_4(%arg0: i32, %arg1: i32, %arg2: i32, %arg3: i32) -> (i32, i32, i32, i32) {
    %c0_i32 = arith.constant 0 : i32
    %c0_i32_0 = arith.constant 0 : i32
    return %arg0, %arg1, %c0_i32, %arg2 : i32, i32, i32, i32
  }
}

</mosaic_0001>

<llo_original>
// kernel: tpu_custom_call.1
$region0: #{tpu_custom_call.1}
  #allocation0 [shape = 'u32[]', space=smem, size = 0x4, offset = 0x4, fixed_abs, tag = 'smem constant byte address 0x4 - core index']
  #allocation1 [shape = 'u32[144,128]{1,0:T(1,128)}', space=vmem, size = 0x12000, scoped, tag = 'internal scratch']
  #allocation2 [shape = 'f32[2,512]{1,0:T(2,128)}', space=vmem, size = 0x1000, scoped, tag = 'scratch operand']
  %s0 = inlined_call_operand.hbm [shape: bf16[1,2,16], index: 0, kind: input, shape index: {}]
  %s1 = inlined_call_operand.hbm [shape: bf16[1,16,1024], index: 1, kind: input, shape index: {}]
  %s2 = inlined_call_operand.hbm [shape: bf16[1,2,1024], index: 2, kind: output, shape index: {0}]
  %s3 = inlined_call_operand.hbm [shape: f32[1,1,1,1024], index: 3, kind: output, shape index: {1}]
  %s4 = inlined_call_operand.hbm [shape: f32[1,1,1,1024], index: 4, kind: output, shape index: {2}]
  %5 = xla_tuple %s2, %s3, %s4
  %s6 = sld [smem:[#allocation0]]
  $region73: #{tpu_custom_call.1} parent=0
    _
  %s8 = ssub.s32 1, %s6
  %s9 = scalar_select 0, %s8, %s6
  $region1: #{tpu_custom_call.1} parent=0
    #allocation3 [shape = 'u8[512]{0}', space=vmem, size = 0x400, scoped, tag = 'input window, operand 0, single buffered']
    #allocation4 [shape = 's32[2]{0}', space=sflag, size = 0x8, scoped, tag = 'scoped memory for tpu_custom_call.1']
    #allocation5 [shape = 's32[2]{0}', space=sflag, size = 0x8, scoped, tag = 'scoped memory for tpu_custom_call.1']
    #allocation6 [shape = 'u8[32768]{0}', space=vmem, size = 0x8000, scoped, tag = 'input window, operand 1']
    #allocation7 [shape = 's32[2]{0}', space=sflag, size = 0x8, scoped, tag = 'scoped memory for tpu_custom_call.1']
    #allocation8 [shape = 'u8[4096]{0}', space=vmem, size = 0x1000, scoped, tag = 'output window, operand 0']
    #allocation9 [shape = 'u8[4096]{0}', space=vmem, size = 0x1000, scoped, tag = 'output window, operand 1']
    #allocation10 [shape = 's32[2]{0}', space=sflag, size = 0x8, scoped, tag = 'scoped memory for tpu_custom_call.1']
    #allocation11 [shape = 'u8[4096]{0}', space=vmem, size = 0x1000, scoped, tag = 'output window, operand 2']
    %10 = vsyncpa [#allocation4], 0
    %11 = vsyncpa [#allocation7], 0
    %s12 = scalar_lea.sflag [#allocation7], 1
    %13 = vsyncpa %s12, 0
    %14 = vsyncpa [#allocation5], 0
    %s15 = scalar_lea.sflag [#allocation5], 1
    %16 = vsyncpa %s15, 0
    %17 = vsyncpa [#allocation10], 0
    %s18 = scalar_lea.sflag [#allocation10], 1
    %19 = vsyncpa %s18, 0
    loop: start=0, step=1, limit=4
    $region2: #{tpu_custom_call.1} parent=1 // loop_pre_header
      _
    $region3: #{tpu_custom_call.1} parent=1 // loop_header
      %s21 = sphi 0, %s25
      %p22 = scmp.ge.s32.totalorder %s21, 4
      %s28 = sphi 0, %s54
      %s29 = sphi 0, %s50
      %s30 = sphi 0, %s46
      %s31 = sphi 0, %s42
      %s32 = sphi 0, %s28
      %s33 = sphi 0, %s29
      %s34 = sphi 0, %s30
      %s35 = sphi 0, %s31
      %s36 = sphi 0, %s32
      %s37 = sphi 0, %s33
      %s38 = sphi 0, %s34
      %s39 = sphi 0, %s35
      %s61 = sphi 0, %s63
      %s64 = sphi 0, %s61
      %s65 = sphi 0, %s64
      %s81 = sphi 0, %s65
      %s91 = sphi 0, %s93
      %s94 = sphi 0, %s91
      %s95 = sphi 0, %s94
      %s111 = sphi 0, %s95
      %s121 = sphi 0, %s123
      %s124 = sphi 0, %s121
      %s125 = sphi 0, %s124
      %s141 = sphi 0, %s125
      %s151 = sphi 0, %s153
      %s154 = sphi 0, %s151
      %s155 = sphi 0, %s154
      %s171 = sphi 0, %s155
      %s181 = sphi 0, %s183
      %s184 = sphi 0, %s181
      %s185 = sphi 0, %s184
      %s201 = sphi 0, %s185
    $region4: #{tpu_custom_call.1} parent=1 // loop_header_branch
      %24 = sbr.rel (%p22) target = $region8
    $region5: #{tpu_custom_call.1} parent=1 // loop_body
      %s26 = ssub.s32 %s21, 1
      %s27 = ssub.s32 %s21, 2
      %s40 = sadd.s32 1, %s31
      %p41 = scmp.ge.s32.totalorder %s40, 1
      %s42 = scalar_select %p41, 0, %s40
      %s43 = sadd.s32 1, %s30
      %s44 = scalar_select %p41, %s43, %s30
      %p45 = scmp.ge.s32.totalorder %s44, 2
      %s46 = scalar_select %p45, 0, %s44
      %s47 = sadd.s32 1, %s29
      %s48 = scalar_select %p45, %s47, %s29
      %p49 = scmp.ge.s32.totalorder %s48, 1
      %s50 = scalar_select %p49, 0, %s48
      %s51 = sadd.s32 1, %s28
      %s52 = scalar_select %p49, %s51, %s28
      %p53 = scmp.ge.s32.totalorder %s52, 1
      %s54 = scalar_select %p53, 0, %s52
      %s55 = ssub.s32 %s28, %s54
      %s56 = ssub.s32 %s29, %s50
      %s57 = sor.u32 %s55, %s56
      %s58 = ssub.s32 %s31, %s42
      %s59 = sor.u32 %s57, %s58
      %p60 = scmp.eq.s32.totalorder %s59, 0
      %s62 = sadd.s32 %s61, 1
      %s63 = scalar_select %p60, %s61, %s62
      %p66 = pneg %p60
      %p67 = scmp.eq.s32.totalorder %s21, 1
      %p68 = por %p66, %p67
      %p69 = scmp.ne.s32.totalorder %s61, %s64
      %p70 = scmp.eq.s32.totalorder %s21, 0
      %p71 = por %p69, %p70
      %p72 = scmp.ne.s32.totalorder %s61, %s64
      %p73 = scmp.eq.s32.totalorder %s26, 1
      %p74 = por %p72, %p73
      %p75 = scmp.ne.s32.totalorder %s64, %s65
      %p76 = scmp.eq.s32.totalorder %s26, 0
      %p77 = por %p75, %p76
      %p78 = scmp.ne.s32.totalorder %s64, %s65
      %p79 = scmp.eq.s32.totalorder %s27, 1
      %p80 = por %p78, %p79
      %p82 = scmp.ne.s32.totalorder %s65, %s81
      %p83 = scmp.eq.s32.totalorder %s27, 0
      %p84 = por %p82, %p83
      %s85 = ssub.s32 %s28, %s54
      %s86 = ssub.s32 %s31, %s42
      %s87 = sor.u32 %s85, %s86
      %s88 = ssub.s32 %s30, %s46
      %s89 = sor.u32 %s87, %s88
      %p90 = scmp.eq.s32.totalorder %s89, 0
      %s92 = sadd.s32 %s91, 1
      %s93 = scalar_select %p90, %s91, %s92
      %p96 = pneg %p90
      %p97 = scmp.eq.s32.totalorder %s21, 1
      %p98 = por %p96, %p97
      %p99 = scmp.ne.s32.totalorder %s91, %s94
      %p100 = scmp.eq.s32.totalorder %s21, 0
      %p101 = por %p99, %p100
      %p102 = scmp.ne.s32.totalorder %s91, %s94
      %p103 = scmp.eq.s32.totalorder %s26, 1
      %p104 = por %p102, %p103
      %p105 = scmp.ne.s32.totalorder %s94, %s95
      %p106 = scmp.eq.s32.totalorder %s26, 0
      %p107 = por %p105, %p106
      %p108 = scmp.ne.s32.totalorder %s94, %s95
      %p109 = scmp.eq.s32.totalorder %s27, 1
      %p110 = por %p108, %p109
      %p112 = scmp.ne.s32.totalorder %s95, %s111
      %p113 = scmp.eq.s32.totalorder %s27, 0
      %p114 = por %p112, %p113
      %s115 = ssub.s32 %s28, %s54
      %s116 = ssub.s32 %s29, %s50
      %s117 = sor.u32 %s115, %s116
      %s118 = ssub.s32 %s30, %s46
      %s119 = sor.u32 %s117, %s118
      %p120 = scmp.eq.s32.totalorder %s119, 0
      %s122 = sadd.s32 %s121, 1
      %s123 = scalar_select %p120, %s121, %s122
      %p126 = pneg %p120
      %p127 = scmp.eq.s32.totalorder %s21, 1
      %p128 = por %p126, %p127
      %p129 = scmp.ne.s32.totalorder %s121, %s124
      %p130 = scmp.eq.s32.totalorder %s21, 0
      %p131 = por %p129, %p130
      %p132 = scmp.ne.s32.totalorder %s121, %s124
      %p133 = scmp.eq.s32.totalorder %s26, 1
      %p134 = por %p132, %p133
      %p135 = scmp.ne.s32.totalorder %s124, %s125
      %p136 = scmp.eq.s32.totalorder %s26, 0
      %p137 = por %p135, %p136
      %p138 = scmp.ne.s32.totalorder %s124, %s125
      %p139 = scmp.eq.s32.totalorder %s27, 1
      %p140 = por %p138, %p139
      %p142 = scmp.ne.s32.totalorder %s125, %s141
      %p143 = scmp.eq.s32.totalorder %s27, 0
      %p144 = por %p142, %p143
      %s145 = ssub.s32 %s28, %s54
      %s146 = ssub.s32 %s29, %s50
      %s147 = sor.u32 %s145, %s146
      %s148 = ssub.s32 %s30, %s46
      %s149 = sor.u32 %s147, %s148
      %p150 = scmp.eq.s32.totalorder %s149, 0
      %s152 = sadd.s32 %s151, 1
      %s153 = scalar_select %p150, %s151, %s152
      %p156 = pneg %p150
      %p157 = scmp.eq.s32.totalorder %s21, 1
      %p158 = por %p156, %p157
      %p159 = scmp.ne.s32.totalorder %s151, %s154
      %p160 = scmp.eq.s32.totalorder %s21, 0
      %p161 = por %p159, %p160
      %p162 = scmp.ne.s32.totalorder %s151, %s154
      %p163 = scmp.eq.s32.totalorder %s26, 1
      %p164 = por %p162, %p163
      %p165 = scmp.ne.s32.totalorder %s154, %s155
      %p166 = scmp.eq.s32.totalorder %s26, 0
      %p167 = por %p165, %p166
      %p168 = scmp.ne.s32.totalorder %s154, %s155
      %p169 = scmp.eq.s32.totalorder %s27, 1
      %p170 = por %p168, %p169
      %p172 = scmp.ne.s32.totalorder %s155, %s171
      %p173 = scmp.eq.s32.totalorder %s27, 0
      %p174 = por %p172, %p173
      %s175 = ssub.s32 %s28, %s54
      %s176 = ssub.s32 %s29, %s50
      %s177 = sor.u32 %s175, %s176
      %s178 = ssub.s32 %s30, %s46
      %s179 = sor.u32 %s177, %s178
      %p180 = scmp.eq.s32.totalorder %s179, 0
      %s182 = sadd.s32 %s181, 1
      %s183 = scalar_select %p180, %s181, %s182
      %p186 = pneg %p180
      %p187 = scmp.eq.s32.totalorder %s21, 1
      %p188 = por %p186, %p187
      %p189 = scmp.ne.s32.totalorder %s181, %s184
      %p190 = scmp.eq.s32.totalorder %s21, 0
      %p191 = por %p189, %p190
      %p192 = scmp.ne.s32.totalorder %s181, %s184
      %p193 = scmp.eq.s32.totalorder %s26, 1
      %p194 = por %p192, %p193
      %p195 = scmp.ne.s32.totalorder %s184, %s185
      %p196 = scmp.eq.s32.totalorder %s26, 0
      %p197 = por %p195, %p196
      %p198 = scmp.ne.s32.totalorder %s184, %s185
      %p199 = scmp.eq.s32.totalorder %s27, 1
      %p200 = por %p198, %p199
      %p202 = scmp.ne.s32.totalorder %s185, %s201
      %p203 = scmp.eq.s32.totalorder %s27, 0
      %p204 = por %p202, %p203
      %p205 = scmp.le.s32.totalorder 1, %s21
      %p206 = scmp.lt.s32.totalorder %s21, 3
      %p207 = pnand %p205, %p206
      %p208 = pneg %p207
      // Predicated region
      $region9: #{tpu_custom_call.1} parent=5 // pred_check
        _
      $region10: #{tpu_custom_call.1} parent=5 // pred_check_branch
        %210 = sbr.rel (%p207) target = $region12
      $region11: #{tpu_custom_call.1} parent=5 // pred_region
        %s211 = ssub.s32 %s21, 1
        // Predicated region
        $region13: #{tpu_custom_call.1} parent=11 // pred_check
          %p212 = pneg %p77
        $region14: #{tpu_custom_call.1} parent=11 // pred_check_branch
          %214 = sbr.rel (%p212) target = $region16
        $region15: #{tpu_custom_call.1} parent=11 // pred_region
          %s216 = ssub.s32 16, 16
          %217 = vsyncadd [#allocation4], %s216
          %s218 = sadd.s32 %s35, %s33
          %s219 = sadd.s32 %s218, %s32
          %s220 = smul.addr %s219, 16
          %s221 = scalar_lea.hbm %s0, %s220
          %s223 = sshll.u32 [#allocation3], 4
          %s224 = int_to_ptr.vmem [resolvable:$true] %s223
          %226 = dma.hbm_to_vmem [thread:$0]  %s221, 16, %s224, [#allocation4]
        $region16: #{tpu_custom_call.1} parent=11 // pred_fallthru
          _
      $region12: #{tpu_custom_call.1} parent=5 // pred_fallthru
        _
      %p227 = scmp.lt.s32.totalorder %s21, 2
      // Predicated region
      $region17: #{tpu_custom_call.1} parent=5 // pred_check
        %p228 = pneg %p227
      $region18: #{tpu_custom_call.1} parent=5 // pred_check_branch
        %230 = sbr.rel (%p228) target = $region20
      $region19: #{tpu_custom_call.1} parent=5 // pred_region
        // Predicated region
        $region21: #{tpu_custom_call.1} parent=19 // pred_check
          %p231 = pneg %p101
        $region22: #{tpu_custom_call.1} parent=19 // pred_check_branch
          %233 = sbr.rel (%p231) target = $region24
        $region23: #{tpu_custom_call.1} parent=19 // pred_region
          %s234 = sand.u32 %s91, 1
          %s235 = scalar_lea.sflag [#allocation7], %s234
          %s236 = sand.u32 %s91, 1
          %s237 = smul.addr %s236, 32
          %s238 = scalar_lea.vmem [#allocation6], %s237
          %s239 = smul.u32 2, %s31
          %s240 = smul.u32 4, %s30
          %s242 = ssub.s32 512, 512
          %243 = vsyncadd %s235, %s242
          %s244 = smul.addr %s239, 8
          %s245 = sadd.s32 %s240, %s244
          %s246 = smul.addr %s28, 16
          %s247 = sadd.s32 %s245, %s246
          %s248 = smul.addr %s247, 64
          %s249 = scalar_lea.hbm %s1, %s248
          %s250 = sshll.u32 %s238, 4
          %s251 = int_to_ptr.vmem [resolvable:$true] %s250
          %256 = dma.hbm_to_vmem [thread:$0]  %s249, 512, %s251, %s235, 512, 256, 16
        $region24: #{tpu_custom_call.1} parent=19 // pred_fallthru
          _
      $region20: #{tpu_custom_call.1} parent=5 // pred_fallthru
        _
      %p257 = scmp.le.s32.totalorder 1, %s21
      %p258 = scmp.lt.s32.totalorder %s21, 3
      %p259 = pnand %p257, %p258
      %p260 = pneg %p259
      // Predicated region
      $region25: #{tpu_custom_call.1} parent=5 // pred_check
        _
      $region26: #{tpu_custom_call.1} parent=5 // pred_check_branch
        %262 = sbr.rel (%p259) target = $region28
      $region27: #{tpu_custom_call.1} parent=5 // pred_region
        %s263 = ssub.s32 %s21, 1
        // Predicated region
        $region29: #{tpu_custom_call.1} parent=27 // pred_check
          %p264 = pneg %p77
        $region30: #{tpu_custom_call.1} parent=27 // pred_check_branch
          %266 = sbr.rel (%p264) target = $region32
        $region31: #{tpu_custom_call.1} parent=27 // pred_region
          %267 = dma.done [#allocation4], 16
        $region32: #{tpu_custom_call.1} parent=27 // pred_fallthru
          _
        %s268 = sand.u32 %s94, 1
        %s269 = scalar_lea.sflag [#allocation7], %s268
        %s270 = sand.u32 %s94, 1
        %s271 = smul.addr %s270, 32
        %s272 = scalar_lea.vmem [#allocation6], %s271
        // Predicated region
        $region33: #{tpu_custom_call.1} parent=27 // pred_check
          %p273 = pneg %p107
        $region34: #{tpu_custom_call.1} parent=27 // pred_check_branch
          %275 = sbr.rel (%p273) target = $region36
        $region35: #{tpu_custom_call.1} parent=27 // pred_region
          %276 = dma.done %s269, 512
        $region36: #{tpu_custom_call.1} parent=27 // pred_fallthru
          _
        %p277 = pneg %p77
        %p278 = pneg %p74
        %s279 = sand.u32 %s94, 1
        %s280 = scalar_lea.sflag [#allocation7], %s279
        %s281 = sand.u32 %s94, 1
        %s282 = smul.addr %s281, 32
        %s283 = scalar_lea.vmem [#allocation6], %s282
        %p284 = pneg %p107
        %p285 = pneg %p104
        %p286 = pneg %p137
        %p287 = pneg %p134
        %s288 = sand.u32 %s124, 1
        %s289 = scalar_lea.sflag [#allocation5], %s288
        %s290 = sand.u32 %s124, 1
        %s291 = smul.addr %s290, 4
        %s292 = scalar_lea.vmem [#allocation8], %s291
        %p293 = pneg %p167
        %p294 = pneg %p164
        %s295 = sand.u32 %s26, 1
        %s296 = scalar_lea.sflag [#allocation10], %s295
        %s297 = sand.u32 %s154, 1
        %s298 = smul.addr %s297, 4
        %s299 = scalar_lea.vmem [#allocation9], %s298
        %p300 = pneg %p197
        %p301 = pneg %p194
        %s302 = sand.u32 %s26, 1
        %s303 = scalar_lea.sflag [#allocation10], %s302
        %s304 = sand.u32 %s184, 1
        %s305 = smul.addr %s304, 4
        %s306 = scalar_lea.vmem [#allocation11], %s305
        %s307 = smul.u32 2, %s35
        %s308 = smul.u32 4, %s34
        %s309 = smul.u32 4, %s34
        %s310 = smul.u32 4, %s34
        %s311 = smul.u32 4, %s34
        %p313 = scmp.eq.s32.totalorder %s35, 0
        // Predicated region
        $region37: #{tpu_custom_call.1} parent=27 // pred_check
          %p314 = pneg %p313
        $region38: #{tpu_custom_call.1} parent=27 // pred_check_branch
          %316 = sbr.rel (%p314) target = $region40
        $region39: #{tpu_custom_call.1} parent=27 // pred_region
          %317 = vst [vmem:[#allocation2] sm:$0xff] 0.0
        $region40: #{tpu_custom_call.1} parent=27 // pred_fallthru
          _
        %v318 = vld [vmem:[#allocation2] sm:$0xff]
        %v319 = vld [vmem:[#allocation3] sm:$0x1]
        %v320 = vld [vmem:[%s272] sm:$0xff]
        %v321 = vld [vmem:[%s272 + $0x8] sm:$0xff]
        %v322 = vld [vmem:[%s272 + $0x10] sm:$0xff]
        %v323 = vld [vmem:[%s272 + $0x18] sm:$0xff]
        %v328 = vunpack.c.l.b16 %v320
        %v329 = vunpack.c.h.b16 %v320
        %v330 = vunpack.c.l.b16 %v321
        %v331 = vunpack.c.h.b16 %v321
        %v332 = vunpack.c.l.b16 %v322
        %v333 = vunpack.c.h.b16 %v322
        %v334 = vunpack.c.l.b16 %v323
        %v335 = vunpack.c.h.b16 %v323
        %v336 = vpack.c.b16 %v332, %v328
        %v337 = vpack.c.b16 %v333, %v329
        %v338 = vpack.c.b16 %v334, %v330
        %v339 = vpack.c.b16 %v335, %v331
        %vm344 = vcmask 130048
        %v346 = vsel %vm344, %v319, 0
        %348 = vmatprep.subr.bf16.mxu0 %v337
        %349 = vmatpush1.bf16.msra.mxu0 %v336
        %350 = vmatprep.subr.bf16.mxu0 0
        %351 = vmatpush1.bf16.msra.mxu0 0
        %352 = vmatprep.subr.bf16.mxu0 0
        %353 = vmatpush1.bf16.msra.mxu0 0
        %354 = vmatprep.subr.bf16.mxu0 0
        %355 = vmatpush1.bf16.msra.mxu0 0
        %356 = vmatprep.subr.bf16.mxu0 0
        %357 = vmatpush1.bf16.msra.mxu0 0
        %358 = vmatprep.subr.bf16.mxu0 0
        %359 = vmatpush1.bf16.msra.mxu0 0
        %360 = vmatprep.subr.bf16.mxu0 0
        %361 = vmatpush1.bf16.msra.mxu0 0
        %362 = vmatprep.subr.bf16.mxu0 0
        %363 = vmatpush1.bf16.msra.mxu0 0
        %364 = vmatprep.subr.bf16.mxu0 0
        %365 = vmatpush1.bf16.msra.mxu0 0
        %366 = vmatprep.subr.bf16.mxu0 0
        %367 = vmatpush1.bf16.msra.mxu0 0
        %368 = vmatprep.subr.bf16.mxu0 0
        %369 = vmatpush1.bf16.msra.mxu0 0
        %370 = vmatprep.subr.bf16.mxu0 0
        %371 = vmatpush1.bf16.msra.mxu0 0
        %372 = vmatprep.subr.bf16.mxu0 0
        %373 = vmatpush1.bf16.msra.mxu0 0
        %374 = vmatprep.subr.bf16.mxu0 0
        %375 = vmatpush1.bf16.msra.mxu0 0
        %376 = vmatprep.subr.bf16.mxu0 0
        %377 = vmatpush1.bf16.msra.mxu0 0
        %378 = vmatprep.subr.bf16.mxu0 0
        %379 = vmatpush1.bf16.msra.mxu0 0
        %380 = vmatprep.mubr.bf16.mxu0 0
        %381 = vmatmul.mubr.bf16.gmra.mrb[0].mxu0 %v346
        %v382 = vpop.f32.mrb[0].mxu0
        %v383 = vadd.f32 0.0, %v382
        %v384 = vpop.f32.mrb[0].mxu0
        %v385 = vadd.f32 0.0, %v384
        %v386 = vpop.f32.mrb[0].mxu0
        %v387 = vpop.f32.mrb[0].mxu0
        %388 = vdwg.mxu0
        %389 = vmatprep.subr.bf16.mxu0 %v339
        %390 = vmatpush1.bf16.msra.mxu0 %v338
        %391 = vmatprep.subr.bf16.mxu0 0
        %392 = vmatpush1.bf16.msra.mxu0 0
        %393 = vmatprep.subr.bf16.mxu0 0
        %394 = vmatpush1.bf16.msra.mxu0 0
        %395 = vmatprep.subr.bf16.mxu0 0
        %396 = vmatpush1.bf16.msra.mxu0 0
        %397 = vmatprep.subr.bf16.mxu0 0
        %398 = vmatpush1.bf16.msra.mxu0 0
        %399 = vmatprep.subr.bf16.mxu0 0
        %400 = vmatpush1.bf16.msra.mxu0 0
        %401 = vmatprep.subr.bf16.mxu0 0
        %402 = vmatpush1.bf16.msra.mxu0 0
        %403 = vmatprep.subr.bf16.mxu0 0
        %404 = vmatpush1.bf16.msra.mxu0 0
        %405 = vmatprep.subr.bf16.mxu0 0
        %406 = vmatpush1.bf16.msra.mxu0 0
        %407 = vmatprep.subr.bf16.mxu0 0
        %408 = vmatpush1.bf16.msra.mxu0 0
        %409 = vmatprep.subr.bf16.mxu0 0
        %410 = vmatpush1.bf16.msra.mxu0 0
        %411 = vmatprep.subr.bf16.mxu0 0
        %412 = vmatpush1.bf16.msra.mxu0 0
        %413 = vmatprep.subr.bf16.mxu0 0
        %414 = vmatpush1.bf16.msra.mxu0 0
        %415 = vmatprep.subr.bf16.mxu0 0
        %416 = vmatpush1.bf16.msra.mxu0 0
        %417 = vmatprep.subr.bf16.mxu0 0
        %418 = vmatpush1.bf16.msra.mxu0 0
        %419 = vmatprep.subr.bf16.mxu0 0
        %420 = vmatpush1.bf16.msra.mxu0 0
        %421 = vmatprep.mubr.bf16.mxu0 0
        %422 = vmatmul.mubr.bf16.gmra.mrb[0].mxu0 %v346
        %v423 = vpop.f32.mrb[0].mxu0
        %v424 = vadd.f32 0.0, %v423
        %v425 = vpop.f32.mrb[0].mxu0
        %v426 = vadd.f32 0.0, %v425
        %v427 = vpop.f32.mrb[0].mxu0
        %v428 = vpop.f32.mrb[0].mxu0
        %429 = vdwg.mxu0
        %v434 = vcombine.low %v383, %v385
        %v435 = vcombine.low %v424, %v426
        %v437 = vunpack.c.l.s4 1983009808
        %v438 = vunpack.c.0.s8 %v437
        %v439 = vlaneseq
        %v440 = vshrl.u32 %v439, 7
        %v441 = vsub.s32 %v438, %v440
        %v442 = vrot.slane %v434, %v441
        %v444 = vunpack.c.l.s4 1983009808
        %v445 = vunpack.c.0.s8 %v444
        %v446 = vlaneseq
        %v447 = vshrl.u32 %v446, 7
        %v448 = vsub.s32 %v445, %v447
        %v449 = vrot.slane %v435, %v448
        %v450 = vcombine.low %v442, %v449
        %v452 = vadd.f32 %v318, %v450
        %453 = vst [vmem:[#allocation2] sm:$0xff] %v452
        // Predicated region
        $region41: #{tpu_custom_call.1} parent=27 // pred_check
          %p454 = pneg %p313
        $region42: #{tpu_custom_call.1} parent=27 // pred_check_branch
          %456 = sbr.rel (%p454) target = $region44
        $region43: #{tpu_custom_call.1} parent=27 // pred_region
          %v457 = vld [vmem:[#allocation2] sm:$0xff]
          %v459 = vcombine.high %v457, %v457
          %v461 = vunpack.c.l.s4 1983009808
          %v462 = vunpack.c.0.s8 %v461
          %v463 = vlaneseq
          %v464 = vshrl.u32 %v463, 7
          %v465 = vsub.s32 %v462, %v464
          %v466 = vrot.slane %v457, %v465
          %v468 = vunpack.c.l.s4 1983009808
          %v469 = vunpack.c.0.s8 %v468
          %v470 = vlaneseq
          %v471 = vshrl.u32 %v470, 7
          %v472 = vsub.s32 %v469, %v471
          %v473 = vrot.slane %v459, %v472
          %v474 = vcombine.high %v466, %v466
          %v475 = vcombine.high %v473, %v473
          %vm480 = vcmask 1041408
          %v481 = vsel %vm480, %v466, 0.0
          %v482 = vrot.slane %v481, 4
          %v483 = vadd.f32 %v481, %v482
          %v484 = vrot.slane %v483, 2
          %v485 = vadd.f32 %v483, %v484
          %v486 = vrot.slane %v485, 1
          %v487 = vadd.f32 %v485, %v486
          %v488 = vsel %vm480, %v474, 0.0
          %v489 = vrot.slane %v488, 4
          %v490 = vadd.f32 %v488, %v489
          %v491 = vrot.slane %v490, 2
          %v492 = vadd.f32 %v490, %v491
          %v493 = vrot.slane %v492, 1
          %v494 = vadd.f32 %v492, %v493
          %v495 = vsel %vm480, %v473, 0.0
          %v496 = vrot.slane %v495, 4
          %v497 = vadd.f32 %v495, %v496
          %v498 = vrot.slane %v497, 2
          %v499 = vadd.f32 %v497, %v498
          %v500 = vrot.slane %v499, 1
          %v501 = vadd.f32 %v499, %v500
          %v502 = vsel %vm480, %v475, 0.0
          %v503 = vrot.slane %v502, 4
          %v504 = vadd.f32 %v502, %v503
          %v505 = vrot.slane %v504, 2
          %v506 = vadd.f32 %v504, %v505
          %v507 = vrot.slane %v506, 1
          %v508 = vadd.f32 %v506, %v507
          %v513 = vcombine.low %v487, %v494
          %v514 = vcombine.low %v501, %v508
          %v516 = vunpack.c.l.s4 1966171168
          %v517 = vunpack.c.0.s8 %v516
          %v518 = vlaneseq
          %v519 = vshrl.u32 %v518, 7
          %v520 = vsub.s32 %v517, %v519
          %v521 = vrot.slane %v513, %v520
          %v523 = vunpack.c.l.s4 1966171168
          %v524 = vunpack.c.0.s8 %v523
          %v525 = vlaneseq
          %v526 = vshrl.u32 %v525, 7
          %v527 = vsub.s32 %v524, %v526
          %v528 = vrot.slane %v514, %v527
          %v529 = vcombine.low %v521, %v528
          %v531 = vunpack.c.l.s4 1966171168
          %v532 = vunpack.c.0.s8 %v531
          %v533 = vlaneseq
          %v534 = vshrl.u32 %v533, 7
          %v535 = vsub.s32 %v532, %v534
          %v536 = vrot.slane %v529, %v535
          %v538 = vlaneseq
          %vm539 = vcmp.ge.s32.totalorder %v538, 0
          %vm540 = vcmp.lt.s32.totalorder %v538, 512
          %vm541 = vmand %vm539, %vm540
          %542 = vst.msk [vmem:[%s299] sm:$0xf] %vm541, %v536
          %v543 = vmul.f32 %v457, %v457
          %v545 = vcombine.high %v543, %v543
          %v547 = vunpack.c.l.s4 1983009808
          %v548 = vunpack.c.0.s8 %v547
          %v549 = vlaneseq
          %v550 = vshrl.u32 %v549, 7
          %v551 = vsub.s32 %v548, %v550
          %v552 = vrot.slane %v543, %v551
          %v554 = vunpack.c.l.s4 1983009808
          %v555 = vunpack.c.0.s8 %v554
          %v556 = vlaneseq
          %v557 = vshrl.u32 %v556, 7
          %v558 = vsub.s32 %v555, %v557
          %v559 = vrot.slane %v545, %v558
          %v560 = vcombine.high %v552, %v552
          %v561 = vcombine.high %v559, %v559
          %v566 = vsel %vm480, %v552, 0.0
          %v567 = vrot.slane %v566, 4
          %v568 = vadd.f32 %v566, %v567
          %v569 = vrot.slane %v568, 2
          %v570 = vadd.f32 %v568, %v569
          %v571 = vrot.slane %v570, 1
          %v572 = vadd.f32 %v570, %v571
          %v573 = vsel %vm480, %v560, 0.0
          %v574 = vrot.slane %v573, 4
          %v575 = vadd.f32 %v573, %v574
          %v576 = vrot.slane %v575, 2
          %v577 = vadd.f32 %v575, %v576
          %v578 = vrot.slane %v577, 1
          %v579 = vadd.f32 %v577, %v578
          %v580 = vsel %vm480, %v559, 0.0
          %v581 = vrot.slane %v580, 4
          %v582 = vadd.f32 %v580, %v581
          %v583 = vrot.slane %v582, 2
          %v584 = vadd.f32 %v582, %v583
          %v585 = vrot.slane %v584, 1
          %v586 = vadd.f32 %v584, %v585
          %v587 = vsel %vm480, %v561, 0.0
          %v588 = vrot.slane %v587, 4
          %v589 = vadd.f32 %v587, %v588
          %v590 = vrot.slane %v589, 2
          %v591 = vadd.f32 %v589, %v590
          %v592 = vrot.slane %v591, 1
          %v593 = vadd.f32 %v591, %v592
          %v598 = vcombine.low %v572, %v579
          %v599 = vcombine.low %v586, %v593
          %v601 = vunpack.c.l.s4 1966171168
          %v602 = vunpack.c.0.s8 %v601
          %v603 = vlaneseq
          %v604 = vshrl.u32 %v603, 7
          %v605 = vsub.s32 %v602, %v604
          %v606 = vrot.slane %v598, %v605
          %v608 = vunpack.c.l.s4 1966171168
          %v609 = vunpack.c.0.s8 %v608
          %v610 = vlaneseq
          %v611 = vshrl.u32 %v610, 7
          %v612 = vsub.s32 %v609, %v611
          %v613 = vrot.slane %v599, %v612
          %v614 = vcombine.low %v606, %v613
          %v616 = vunpack.c.l.s4 1966171168
          %v617 = vunpack.c.0.s8 %v616
          %v618 = vlaneseq
          %v619 = vshrl.u32 %v618, 7
          %v620 = vsub.s32 %v617, %v619
          %v621 = vrot.slane %v614, %v620
          %623 = vst.msk [vmem:[%s306] sm:$0xf] %vm541, %v621
          %v624 = vpack.c.bf16 %v466, %v466
          %v625 = vpack.c.bf16 %v474, %v474
          %v626 = vpack.c.bf16 %v473, %v473
          %v627 = vpack.c.bf16 %v475, %v475
          %v632 = vcombine.low %v624, %v625
          %v633 = vcombine.low %v626, %v627
          %v635 = vunpack.c.l.s4 1966171168
          %v636 = vunpack.c.0.s8 %v635
          %v637 = vlaneseq
          %v638 = vshrl.u32 %v637, 7
          %v639 = vsub.s32 %v636, %v638
          %v640 = vrot.slane %v632, %v639
          %v642 = vunpack.c.l.s4 1966171168
          %v643 = vunpack.c.0.s8 %v642
          %v644 = vlaneseq
          %v645 = vshrl.u32 %v644, 7
          %v646 = vsub.s32 %v643, %v645
          %v647 = vrot.slane %v633, %v646
          %v648 = vcombine.low %v640, %v647
          %v650 = vunpack.c.l.s4 1966171168
          %v651 = vunpack.c.0.s8 %v650
          %v652 = vlaneseq
          %v653 = vshrl.u32 %v652, 7
          %v654 = vsub.s32 %v651, %v653
          %v655 = vrot.slane %v648, %v654
          %657 = vst [vmem:[%s292] sm:$0xf] %v655
        $region44: #{tpu_custom_call.1} parent=27 // pred_fallthru
          _
        %s658 = sand.u32 %s124, 1
        %s659 = scalar_lea.sflag [#allocation5], %s658
        %s660 = sand.u32 %s124, 1
        %s661 = smul.addr %s660, 4
        %s662 = scalar_lea.vmem [#allocation8], %s661
        %s663 = sand.u32 %s26, 1
        %s664 = scalar_lea.sflag [#allocation10], %s663
        %s665 = sand.u32 %s154, 1
        %s666 = smul.addr %s665, 4
        %s667 = scalar_lea.vmem [#allocation9], %s666
        %s668 = sand.u32 %s26, 1
        %s669 = scalar_lea.sflag [#allocation10], %s668
        %s670 = sand.u32 %s184, 1
        %s671 = smul.addr %s670, 4
        %s672 = scalar_lea.vmem [#allocation11], %s671
        // Predicated region
        $region45: #{tpu_custom_call.1} parent=27 // pred_check
          %p673 = pneg %p134
        $region46: #{tpu_custom_call.1} parent=27 // pred_check_branch
          %675 = sbr.rel (%p673) target = $region48
        $region47: #{tpu_custom_call.1} parent=27 // pred_region
          %s676 = smul.u32 4, %s34
          %s678 = ssub.s32 64, 64
          %679 = vsyncadd %s659, %s678
          %s680 = smul.addr %s33, 8
          %s681 = sadd.s32 %s676, %s680
          %s682 = smul.addr %s32, 8
          %s683 = sadd.s32 %s681, %s682
          %s684 = smul.addr %s683, 16
          %s685 = scalar_lea.hbm %s2, %s684
          %s687 = sshll.u32 %s662, 4
          %s688 = int_to_ptr.vmem [resolvable:$true] %s687
          %690 = dma.vmem_to_hbm [thread:$0]  %s688, 64, %s685, %s659
        $region48: #{tpu_custom_call.1} parent=27 // pred_fallthru
          _
        // Predicated region
        $region49: #{tpu_custom_call.1} parent=27 // pred_check
          %p691 = pneg %p164
        $region50: #{tpu_custom_call.1} parent=27 // pred_check_branch
          %693 = sbr.rel (%p691) target = $region52
        $region51: #{tpu_custom_call.1} parent=27 // pred_region
          %s694 = smul.u32 4, %s34
          %s696 = ssub.s32 64, 64
          %697 = vsyncadd %s664, %s696
          %s698 = smul.addr %s33, 8
          %s699 = sadd.s32 %s694, %s698
          %s700 = smul.addr %s32, 8
          %s701 = sadd.s32 %s699, %s700
          %s702 = smul.addr %s701, 16
          %s703 = scalar_lea.hbm %s3, %s702
          %s705 = sshll.u32 %s667, 4
          %s706 = int_to_ptr.vmem [resolvable:$true] %s705
          %708 = dma.vmem_to_hbm [thread:$0]  %s706, 64, %s703, %s664
        $region52: #{tpu_custom_call.1} parent=27 // pred_fallthru
          _
        // Predicated region
        $region53: #{tpu_custom_call.1} parent=27 // pred_check
          %p709 = pneg %p194
        $region54: #{tpu_custom_call.1} parent=27 // pred_check_branch
          %711 = sbr.rel (%p709) target = $region56
        $region55: #{tpu_custom_call.1} parent=27 // pred_region
          %s712 = smul.u32 4, %s34
          %s714 = ssub.s32 64, 64
          %715 = vsyncadd %s669, %s714
          %s716 = smul.addr %s33, 8
          %s717 = sadd.s32 %s712, %s716
          %s718 = smul.addr %s32, 8
          %s719 = sadd.s32 %s717, %s718
          %s720 = smul.addr %s719, 16
          %s721 = scalar_lea.hbm %s4, %s720
          %s723 = sshll.u32 %s672, 4
          %s724 = int_to_ptr.vmem [resolvable:$true] %s723
          %726 = dma.vmem_to_hbm [thread:$0]  %s724, 64, %s721, %s669
        $region56: #{tpu_custom_call.1} parent=27 // pred_fallthru
          _
      $region28: #{tpu_custom_call.1} parent=5 // pred_fallthru
        _
      %p727 = scmp.le.s32.totalorder 2, %s21
      // Predicated region
      $region57: #{tpu_custom_call.1} parent=5 // pred_check
        %p728 = pneg %p727
      $region58: #{tpu_custom_call.1} parent=5 // pred_check_branch
        %730 = sbr.rel (%p728) target = $region60
      $region59: #{tpu_custom_call.1} parent=5 // pred_region
        %s731 = ssub.s32 %s21, 2
        // Predicated region
        $region61: #{tpu_custom_call.1} parent=59 // pred_check
          %p732 = pneg %p140
        $region62: #{tpu_custom_call.1} parent=59 // pred_check_branch
          %734 = sbr.rel (%p732) target = $region64
        $region63: #{tpu_custom_call.1} parent=59 // pred_region
          %s735 = sand.u32 %s125, 1
          %s736 = scalar_lea.sflag [#allocation5], %s735
          %s737 = sand.u32 %s125, 1
          %s738 = smul.addr %s737, 4
          %s739 = scalar_lea.vmem [#allocation8], %s738
          %740 = dma.done %s736, 64
        $region64: #{tpu_custom_call.1} parent=59 // pred_fallthru
          _
        // Predicated region
        $region65: #{tpu_custom_call.1} parent=59 // pred_check
          %p741 = pneg %p170
        $region66: #{tpu_custom_call.1} parent=59 // pred_check_branch
          %743 = sbr.rel (%p741) target = $region68
        $region67: #{tpu_custom_call.1} parent=59 // pred_region
          %s744 = sand.u32 %s27, 1
          %s745 = scalar_lea.sflag [#allocation10], %s744
          %s746 = sand.u32 %s155, 1
          %s747 = smul.addr %s746, 4
          %s748 = scalar_lea.vmem [#allocation9], %s747
          %749 = dma.done %s745, 64
        $region68: #{tpu_custom_call.1} parent=59 // pred_fallthru
          _
        // Predicated region
        $region69: #{tpu_custom_call.1} parent=59 // pred_check
          %p750 = pneg %p200
        $region70: #{tpu_custom_call.1} parent=59 // pred_check_branch
          %752 = sbr.rel (%p750) target = $region72
        $region71: #{tpu_custom_call.1} parent=59 // pred_region
          %s753 = sand.u32 %s27, 1
          %s754 = scalar_lea.sflag [#allocation10], %s753
          %s755 = sand.u32 %s185, 1
          %s756 = smul.addr %s755, 4
          %s757 = scalar_lea.vmem [#allocation11], %s756
          %758 = dma.done %s754, 64
        $region72: #{tpu_custom_call.1} parent=59 // pred_fallthru
          _
      $region60: #{tpu_custom_call.1} parent=5 // pred_fallthru
        _
    $region6: #{tpu_custom_call.1} parent=1 // loop_footer
      %s25 = sadd.s32 1, %s21
    $region7: #{tpu_custom_call.1} parent=1 // loop_footer_branch
      %20 = sbr.rel target = $region3
    $region8: #{tpu_custom_call.1} parent=1 // loop_exit
      _
    %759 = vsyncpa [#allocation4], 1
    %s760 = scalar_lea.sflag [#allocation4], 1
    %761 = vsyncpa %s760, 1
    %762 = vsyncpa [#allocation7], 1
    %s763 = scalar_lea.sflag [#allocation7], 1
    %764 = vsyncpa %s763, 1
    %765 = vsyncpa [#allocation5], 1
    %s766 = scalar_lea.sflag [#allocation5], 1
    %767 = vsyncpa %s766, 1
    %768 = vsyncpa [#allocation10], 1
    %s769 = scalar_lea.sflag [#allocation10], 1
    %770 = vsyncpa %s769, 1

</llo_original>
